<compile_context>
chip_gen: v5e
topology: v5e:2x2
jax: 0.10.0
libtpu: 0.0.40
codegen_flags: <defaults>
</compile_context>

<pallas_src>
import functools

import jax
import jax.numpy as jnp
from jax.experimental import pallas as pl
from jax.experimental.pallas import tpu as pltpu


# --------------------------------------------------------------------------- #
# Kernel
# --------------------------------------------------------------------------- #
def _loss_kernel(a_ref, p_ref, n_ref, o_ref, *, feat_dim, inv_beta, eps):
    """Per-row lossless-triplet loss for one (TB, N) batch tile.

    Writes the TB per-row losses lane-dense into a (1, TB) output block.
    """
    a = a_ref[...]                     # (TB, N) f32
    p = p_ref[...]
    n = n_ref[...]

    dp = a - p
    dn = a - n
    sq_p = dp * dp                     # (TB, N)
    sq_n = dn * dn

    # Feature-dim row sums on the MXU (idle otherwise).  Contract N against N
    # so the result lands lane-dense: (1, N) x (TB, N)^T -> (1, TB).
    ones_row = jnp.ones((1, sq_p.shape[1]), dtype=jnp.float32)
    dims = (((1,), (1,)), ((), ()))
    dist_p = jax.lax.dot_general(ones_row, sq_p, dims,
                                 precision=jax.lax.Precision.HIGHEST,
                                 preferred_element_type=jnp.float32)  # (1, TB)
    dist_n = jax.lax.dot_general(ones_row, sq_n, dims,
                                 precision=jax.lax.Precision.HIGHEST,
                                 preferred_element_type=jnp.float32)  # (1, TB)

    one_eps = jnp.float32(1.0 + eps)
    # Multiply by 1/beta (folded constant) instead of dividing in the hot path.
    loss_p = -jnp.log(one_eps - dist_p * inv_beta)
    loss_n = -jnp.log(one_eps - (feat_dim - dist_n) * inv_beta)
    o_ref[...] = (loss_p + loss_n).astype(o_ref.dtype)                # (1, TB)


# --------------------------------------------------------------------------- #
# Tile sizing helpers
# --------------------------------------------------------------------------- #
def _round_up(x, m):
    return ((x + m - 1) // m) * m


def _vmem_capacity_bytes():
    """Physical VMEM per TensorCore (128 MiB v5e/v6e, 64 MiB v7x)."""
    try:
        info = pltpu.get_tpu_info()
        cap = int(getattr(info, "vmem_capacity_bytes", 0))
        if cap > 0:
            return cap
    except Exception:
        pass
    return 64 * 1024 * 1024  # conservative default (v7x per-core VMEM)


def _pick_tiling(batch, feat, cap):
    """Pick (block_rows, padded_batch) for the (block_rows, feat) input tiles."""
    # Budget for the 3 double-buffered f32 input tiles: stay well inside the
    # scoped VMEM on every generation (<= 24 MiB on 128-MiB parts, <= 16 MiB
    # on 64-MiB v7x) so there is headroom for the output + compiler scratch.
    budget = min(cap // 4, 24 * 1024 * 1024)
    bytes_per_row = 3 * 2 * feat * 4          # 3 inputs x 2 pipeline bufs x f32
    rows = max(budget // bytes_per_row, 8)

    if rows >= batch:
        # Whole (padded) batch fits in a single tile.
        block_rows = _round_up(batch, 8)
        return block_rows, block_rows

    # Multi-tile: block_rows must be a multiple of 128 so the lane-dense
    # (1, block_rows) output block is a legal TPU tiling.
    block_rows = max((rows // 128) * 128, 128)
    block_rows = min(block_rows, 4096)
    # TODO(synk): for extremely wide embeddings (N >> 8k f32) the feature dim
    # should be tiled as well; not needed for typical embedding sizes.
    return block_rows, _round_up(batch, block_rows)


def _vmem_limit(block_rows, feat, cap):
    """Scoped-VMEM limit: double-buffered inputs + output + headroom."""
    need = 3 * 2 * block_rows * feat * 4 + (4 << 20)
    return int(min(max(need, 32 << 20), cap - (4 << 20)))


# --------------------------------------------------------------------------- #
# Public wrapper (mirrors LosslessTripletLoss.forward)
# --------------------------------------------------------------------------- #
def lossless_triplet_loss(a, p, n, *, beta=None, eps=1e-8, reduction="mean"):
    assert a.shape == p.shape == n.shape, "Shapes dont match."
    assert reduction in ("none", "mean", "sum")
    assert a.ndim == 2
    batch, feat = a.shape
    beta_v = float(feat if beta is None else beta)

    # Bandwidth-bound kernel: compute in f32.  (Supplying bf16 embeddings would
    # halve HBM traffic; block_rows would then need to be a multiple of 16.)
    a = a.astype(jnp.float32)
    p = p.astype(jnp.float32)
    n = n.astype(jnp.float32)

    cap = _vmem_capacity_bytes()
    block_rows, batch_pad = _pick_tiling(batch, feat, cap)
    if batch_pad != batch:
        pad = ((0, batch_pad - batch), (0, 0))
        a, p, n = jnp.pad(a, pad), jnp.pad(p, pad), jnp.pad(n, pad)

    grid = (batch_pad // block_rows,)
    in_spec = pl.BlockSpec((block_rows, feat), lambda i: (i, 0))
    out_spec = pl.BlockSpec((1, block_rows), lambda i: (0, i))   # lane-dense

    kernel = functools.partial(
        _loss_kernel,
        feat_dim=float(feat),
        inv_beta=1.0 / beta_v,
        eps=float(eps),
    )
    per_row = pl.pallas_call(
        kernel,
        out_shape=jax.ShapeDtypeStruct((1, batch_pad), jnp.float32),
        grid=grid,
        in_specs=[in_spec, in_spec, in_spec],
        out_specs=out_spec,
        compiler_params=pltpu.CompilerParams(
            dimension_semantics=("parallel",),
            vmem_limit_bytes=_vmem_limit(block_rows, feat, cap),
        ),
    )(a, p, n)

    rows = per_row[0, :batch]          # drop padded rows
    if reduction == "none":
        return rows
    if reduction == "mean":
        return jnp.mean(rows)          # tiny final reduce stays in plain JAX
    return jnp.sum(rows)


# --------------------------------------------------------------------------- #
# Pure-JAX reference (mirrors the PyTorch forward)
# --------------------------------------------------------------------------- #
def _ref_loss(a, p, n, beta=None, eps=1e-8, reduction="mean"):
    N = a.shape[1]
    b = N if beta is None else beta
    dist_p = jnp.sum((a - p) ** 2, axis=1)
    dist_n = jnp.sum((a - n) ** 2, axis=1)
    dist_p = -jnp.log(-dist_p / b + 1 + eps)
    dist_n = -jnp.log(-(N - dist_n) / b + 1 + eps)
    out = dist_n + dist_p
    if reduction == "none":
        return out
    if reduction == "mean":
        return out.mean()
    return out.sum()


if __name__ == "__main__":
    key = jax.random.PRNGKey(0)
    ka, kp, kn = jax.random.split(key, 3)
    B, N = 16, 32   # anchors/positives/negatives: (batch, embedding_dim) in (0, 1)
    a = jax.random.uniform(ka, (B, N), dtype=jnp.float32)
    p = jax.random.uniform(kp, (B, N), dtype=jnp.float32)
    n = jax.random.uniform(kn, (B, N), dtype=jnp.float32)

    out_mean = jax.block_until_ready(lossless_triplet_loss(a, p, n, reduction="mean"))
    out_sum = jax.block_until_ready(lossless_triplet_loss(a, p, n, reduction="sum"))
    out_none = jax.block_until_ready(lossless_triplet_loss(a, p, n, reduction="none"))

    assert jnp.allclose(out_mean, _ref_loss(a, p, n, reduction="mean"), atol=1e-5, rtol=1e-5)
    assert jnp.allclose(out_sum, _ref_loss(a, p, n, reduction="sum"), atol=1e-5, rtol=1e-5)
    assert jnp.allclose(out_none, _ref_loss(a, p, n, reduction="none"), atol=1e-5, rtol=1e-5)

    # Ragged batch (exercises the zero-pad + slice path).
    Br = 13
    out_r = jax.block_until_ready(
        lossless_triplet_loss(a[:Br], p[:Br], n[:Br], reduction="mean"))
    assert jnp.allclose(out_r, _ref_loss(a[:Br], p[:Br], n[:Br], reduction="mean"),
                        atol=1e-5, rtol=1e-5)

    print("KERNEL_OK")
</pallas_src>

<mosaic_0001>
module attributes {stable_mosaic.version = 11 : i64} {
  func.func @_loss_kernel(%arg0: i32, %arg1: memref<16x32xf32, #tpu.memory_space<vmem>>, %arg2: memref<16x32xf32, #tpu.memory_space<vmem>>, %arg3: memref<16x32xf32, #tpu.memory_space<vmem>>, %arg4: memref<1x16xf32, #tpu.memory_space<vmem>>) attributes {dimension_semantics = [#tpu.dimension_semantics<parallel>], iteration_bounds = array<i64: 1>, scalar_prefetch = 0 : i64, scratch_operands = 0 : i64, tpu.core_type = #tpu.core_type<tc>, window_params = [{transform_indices = @transform_0, window_bounds = array<i64: 16, 32>}, {transform_indices = @transform_1, window_bounds = array<i64: 16, 32>}, {transform_indices = @transform_2, window_bounds = array<i64: 16, 32>}, {transform_indices = @transform_3, window_bounds = array<i64: 1, 16>}]} {
    %c0 = arith.constant 0 : index
    %c0_0 = arith.constant 0 : index
    %0 = vector.load %arg1[%c0, %c0_0] : memref<16x32xf32, #tpu.memory_space<vmem>>, vector<16x32xf32>
    %c0_1 = arith.constant 0 : index
    %c0_2 = arith.constant 0 : index
    %1 = vector.load %arg2[%c0_1, %c0_2] : memref<16x32xf32, #tpu.memory_space<vmem>>, vector<16x32xf32>
    %c0_3 = arith.constant 0 : index
    %c0_4 = arith.constant 0 : index
    %2 = vector.load %arg3[%c0_3, %c0_4] : memref<16x32xf32, #tpu.memory_space<vmem>>, vector<16x32xf32>
    %3 = arith.subf %0, %1 : vector<16x32xf32>
    %4 = arith.subf %0, %2 : vector<16x32xf32>
    %5 = arith.mulf %3, %3 : vector<16x32xf32>
    %6 = arith.mulf %4, %4 : vector<16x32xf32>
    %cst = arith.constant 1.000000e+00 : f32
    %7 = vector.broadcast %cst : f32 to vector<1x32xf32>
    %cst_5 = arith.constant dense<0.000000e+00> : vector<1x16xf32>
    %8 = tpu.matmul %7, %5, %cst_5 {dimension_numbers = #tpu.dot_dimension_numbers<[1], [1], [0], [0], [0, 0, 1, 0], [], []>, precision = #tpu.contract_precision<fp32>} : vector<1x32xf32>, vector<16x32xf32>, vector<1x16xf32> -> vector<1x16xf32>
    %cst_6 = arith.constant dense<0.000000e+00> : vector<1x16xf32>
    %9 = tpu.matmul %7, %6, %cst_6 {dimension_numbers = #tpu.dot_dimension_numbers<[1], [1], [0], [0], [0, 0, 1, 0], [], []>, precision = #tpu.contract_precision<fp32>} : vector<1x32xf32>, vector<16x32xf32>, vector<1x16xf32> -> vector<1x16xf32>
    %cst_7 = arith.constant 3.125000e-02 : f32
    %10 = vector.broadcast %cst_7 : f32 to vector<1x16xf32>
    %11 = arith.mulf %8, %10 : vector<1x16xf32>
    %cst_8 = arith.constant 1.000000e+00 : f32
    %12 = vector.broadcast %cst_8 : f32 to vector<1x16xf32>
    %13 = arith.subf %12, %11 : vector<1x16xf32>
    %14 = math.log %13 : vector<1x16xf32>
    %cst_9 = arith.constant 0.000000e+00 : f32
    %15 = vector.broadcast %cst_9 : f32 to vector<1x16xf32>
    %16 = arith.subf %15, %14 : vector<1x16xf32>
    %cst_10 = arith.constant 3.200000e+01 : f32
    %17 = vector.broadcast %cst_10 : f32 to vector<1x16xf32>
    %18 = arith.subf %17, %9 : vector<1x16xf32>
    %cst_11 = arith.constant 3.125000e-02 : f32
    %19 = vector.broadcast %cst_11 : f32 to vector<1x16xf32>
    %20 = arith.mulf %18, %19 : vector<1x16xf32>
    %cst_12 = arith.constant 1.000000e+00 : f32
    %21 = vector.broadcast %cst_12 : f32 to vector<1x16xf32>
    %22 = arith.subf %21, %20 : vector<1x16xf32>
    %23 = math.log %22 : vector<1x16xf32>
    %cst_13 = arith.constant 0.000000e+00 : f32
    %24 = vector.broadcast %cst_13 : f32 to vector<1x16xf32>
    %25 = arith.subf %24, %23 : vector<1x16xf32>
    %26 = arith.addf %16, %25 : vector<1x16xf32>
    %c0_14 = arith.constant 0 : index
    %c0_15 = arith.constant 0 : index
    %27 = vector.load %arg4[%c0_14, %c0_15] : memref<1x16xf32, #tpu.memory_space<vmem>>, vector<1x16xf32>
    tpu.vector_store %arg4[%c0_14, %c0_15], %26 {strides = array<i32>} : memref<1x16xf32, #tpu.memory_space<vmem>>, vector<1x16xf32>,
    return
  }
  func.func @transform_0(%arg0: i32) -> (i32, i32) {
    %c0_i32 = arith.constant 0 : i32
    %c0_i32_0 = arith.constant 0 : i32
    return %arg0, %c0_i32 : i32, i32
  }
  func.func @transform_1(%arg0: i32) -> (i32, i32) {
    %c0_i32 = arith.constant 0 : i32
    %c0_i32_0 = arith.constant 0 : i32
    return %arg0, %c0_i32 : i32, i32
  }
  func.func @transform_2(%arg0: i32) -> (i32, i32) {
    %c0_i32 = arith.constant 0 : i32
    %c0_i32_0 = arith.constant 0 : i32
    return %arg0, %c0_i32 : i32, i32
  }
  func.func @transform_3(%arg0: i32) -> (i32, i32) {
    %c0_i32 = arith.constant 0 : i32
    %c0_i32_0 = arith.constant 0 : i32
    return %c0_i32, %arg0 : i32, i32
  }
}

</mosaic_0001>

<llo_original>
// kernel: tpu_custom_call.1
$region0: #{tpu_custom_call.1}
  #allocation0 [shape = 'u32[]', space=smem, size = 0x4, offset = 0x4, fixed_abs, tag = 'smem constant byte address 0x4 - core index']
  #allocation1 [shape = 'u32[72,128]{1,0:T(1,128)}', space=vmem, size = 0x9000, scoped, tag = 'internal scratch']
  %s0 = inlined_call_operand.hbm [shape: f32[16,32], index: 0, kind: input, shape index: {}]
  %s1 = inlined_call_operand.hbm [shape: f32[16,32], index: 1, kind: input, shape index: {}]
  %s2 = inlined_call_operand.hbm [shape: f32[16,32], index: 2, kind: input, shape index: {}]
  %s3 = inlined_call_operand.hbm [shape: f32[1,16], index: 3, kind: output, shape index: {}]
  %s4 = sld [smem:[#allocation0]]
  $region34: #{tpu_custom_call.1} parent=0
    _
  %s6 = ssub.s32 1, %s4
  %s7 = scalar_select 0, %s6, %s4
  $region1: #{tpu_custom_call.1} parent=0
    #allocation2 [shape = 'u8[8192]{0}', space=vmem, size = 0x2000, scoped, tag = 'input window, operand 0, single buffered']
    #allocation3 [shape = 's32[1]{0}', space=sflag, size = 0x4, scoped, tag = 'scoped memory for tpu_custom_call.1']
    #allocation4 [shape = 's32[1]{0}', space=sflag, size = 0x4, scoped, tag = 'scoped memory for tpu_custom_call.1']
    #allocation5 [shape = 'u8[8192]{0}', space=vmem, size = 0x2000, scoped, tag = 'input window, operand 1, single buffered']
    #allocation6 [shape = 's32[1]{0}', space=sflag, size = 0x4, scoped, tag = 'scoped memory for tpu_custom_call.1']
    #allocation7 [shape = 'u8[8192]{0}', space=vmem, size = 0x2000, scoped, tag = 'input window, operand 2, single buffered']
    #allocation8 [shape = 'u8[512]{0}', space=vmem, size = 0x400, scoped, tag = 'output window, operand 0, single buffered']
    %8 = vsyncpa [#allocation3], 0
    %9 = vsyncpa [#allocation6], 0
    %10 = vsyncpa [#allocation4], 0
    // Predicated region
    $region2: #{tpu_custom_call.1} parent=1 // pred_check
      _
    $region3: #{tpu_custom_call.1} parent=1 // pred_check_branch
      %12 = sbr.rel (0) target = $region5
    $region4: #{tpu_custom_call.1} parent=1 // pred_region
      %14 = vsyncadd [#allocation3], 0
      %s15 = sshll.u32 %s0, 4
      %s16 = int_to_ptr.hbm [resolvable:$true] %s15
      %s17 = sshll.u32 [#allocation2], 4
      %s18 = int_to_ptr.vmem [resolvable:$true] %s17
      %23 = dma.hbm_to_vmem [thread:$0]  %s16, 256, %s18, [#allocation3], 128, 128, 8
    $region5: #{tpu_custom_call.1} parent=1 // pred_fallthru
      _
    // Predicated region
    $region6: #{tpu_custom_call.1} parent=1 // pred_check
      _
    $region7: #{tpu_custom_call.1} parent=1 // pred_check_branch
      %25 = sbr.rel (0) target = $region9
    $region8: #{tpu_custom_call.1} parent=1 // pred_region
      %27 = vsyncadd [#allocation6], 0
      %s28 = sshll.u32 %s1, 4
      %s29 = int_to_ptr.hbm [resolvable:$true] %s28
      %s30 = sshll.u32 [#allocation5], 4
      %s31 = int_to_ptr.vmem [resolvable:$true] %s30
      %36 = dma.hbm_to_vmem [thread:$0]  %s29, 256, %s31, [#allocation6], 128, 128, 8
    $region9: #{tpu_custom_call.1} parent=1 // pred_fallthru
      _
    // Predicated region
    $region10: #{tpu_custom_call.1} parent=1 // pred_check
      _
    $region11: #{tpu_custom_call.1} parent=1 // pred_check_branch
      %38 = sbr.rel (0) target = $region13
    $region12: #{tpu_custom_call.1} parent=1 // pred_region
      %40 = vsyncadd [#allocation6], 0
      %s41 = sshll.u32 %s2, 4
      %s42 = int_to_ptr.hbm [resolvable:$true] %s41
      %s43 = sshll.u32 [#allocation7], 4
      %s44 = int_to_ptr.vmem [resolvable:$true] %s43
      %49 = dma.hbm_to_vmem [thread:$0]  %s42, 256, %s44, [#allocation6], 128, 128, 8
    $region13: #{tpu_custom_call.1} parent=1 // pred_fallthru
      _
    // Predicated region
    $region14: #{tpu_custom_call.1} parent=1 // pred_check
      _
    $region15: #{tpu_custom_call.1} parent=1 // pred_check_branch
      %51 = sbr.rel (0) target = $region17
    $region16: #{tpu_custom_call.1} parent=1 // pred_region
      %53 = dma.done [#allocation3], 256
    $region17: #{tpu_custom_call.1} parent=1 // pred_fallthru
      _
    // Predicated region
    $region18: #{tpu_custom_call.1} parent=1 // pred_check
      _
    $region19: #{tpu_custom_call.1} parent=1 // pred_check_branch
      %55 = sbr.rel (0) target = $region21
    $region20: #{tpu_custom_call.1} parent=1 // pred_region
      %57 = dma.done [#allocation6], 256
    $region21: #{tpu_custom_call.1} parent=1 // pred_fallthru
      _
    // Predicated region
    $region22: #{tpu_custom_call.1} parent=1 // pred_check
      _
    $region23: #{tpu_custom_call.1} parent=1 // pred_check_branch
      %59 = sbr.rel (0) target = $region25
    $region24: #{tpu_custom_call.1} parent=1 // pred_region
      %61 = dma.done [#allocation6], 256
    $region25: #{tpu_custom_call.1} parent=1 // pred_fallthru
      _
    %v62 = vld [vmem:[#allocation2] sm:$0xff]
    %v63 = vld [vmem:[#allocation2 + $0x8] sm:$0xff]
    %v64 = vld [vmem:[#allocation5] sm:$0xff]
    %v65 = vld [vmem:[#allocation5 + $0x8] sm:$0xff]
    %v66 = vld [vmem:[#allocation7] sm:$0xff]
    %v67 = vld [vmem:[#allocation7 + $0x8] sm:$0xff]
    %v68 = vsub.f32 %v62, %v64
    %v69 = vsub.f32 %v63, %v65
    %v70 = vsub.f32 %v62, %v66
    %v71 = vsub.f32 %v63, %v67
    %v72 = vmul.f32 %v68, %v68
    %v73 = vmul.f32 %v69, %v69
    %v74 = vmul.f32 %v70, %v70
    %v75 = vmul.f32 %v71, %v71
    %vm76 = vcmask 261120
    %v78 = vsel %vm76, 1.0, 0
    %v81 = vsel %vm76, %v72, 0
    %v84 = vsel %vm76, %v73, 0
    %86 = vmatpush.xpose.msra.mxu0 0.0
    %87 = vmatpush.xpose.msra.mxu0 0.0
    %88 = vmatpush.xpose.msra.mxu0 0.0
    %89 = vmatpush.xpose.msra.mxu0 0.0
    %90 = vmatpush.xpose.msra.mxu0 0.0
    %91 = vmatpush.xpose.msra.mxu0 0.0
    %92 = vmatpush.xpose.msra.mxu0 0.0
    %93 = vmatpush.xpose.msra.mxu0 0.0
    %94 = vmatpush.xpose.msra.mxu0 0.0
    %95 = vmatpush.xpose.msra.mxu0 0.0
    %96 = vmatpush.xpose.msra.mxu0 0.0
    %97 = vmatpush.xpose.msra.mxu0 0.0
    %98 = vmatpush.xpose.msra.mxu0 0.0
    %99 = vmatpush.xpose.msra.mxu0 0.0
    %v100 = vand.u32 %v84, 4294901760
    %101 = vmatpush.xpose.msra.mxu0 %v100
    %v102 = vand.u32 %v81, 4294901760
    %103 = vmatpush.xpose.msra.mxu0 %v102
    %v104 = vand.u32 %v78, 4294901760
    %v105 = vsub.f32 %v78, %v104
    %v106 = vand.u32 %v105, 4294901760
    %v107 = vsub.f32 %v105, %v106
    %v108 = vand.u32 %v107, 4294901760
    %109 = vmatmul.f32.gmra.mxu0 %v108
    %v110 = vpop.f32.mrf.mxu0
    %v111 = vadd.f32 0.0, %v110
    %112 = vdwg.mxu0
    %113 = vmatpush.xpose.msra.mxu0 0.0
    %114 = vmatpush.xpose.msra.mxu0 0.0
    %115 = vmatpush.xpose.msra.mxu0 0.0
    %116 = vmatpush.xpose.msra.mxu0 0.0
    %117 = vmatpush.xpose.msra.mxu0 0.0
    %118 = vmatpush.xpose.msra.mxu0 0.0
    %119 = vmatpush.xpose.msra.mxu0 0.0
    %120 = vmatpush.xpose.msra.mxu0 0.0
    %121 = vmatpush.xpose.msra.mxu0 0.0
    %122 = vmatpush.xpose.msra.mxu0 0.0
    %123 = vmatpush.xpose.msra.mxu0 0.0
    %124 = vmatpush.xpose.msra.mxu0 0.0
    %125 = vmatpush.xpose.msra.mxu0 0.0
    %126 = vmatpush.xpose.msra.mxu0 0.0
    %v127 = vand.u32 %v84, 4294901760
    %v128 = vsub.f32 %v84, %v127
    %v129 = vand.u32 %v128, 4294901760
    %v130 = vsub.f32 %v128, %v129
    %v131 = vand.u32 %v130, 4294901760
    %132 = vmatpush.xpose.msra.mxu0 %v131
    %v133 = vand.u32 %v81, 4294901760
    %v134 = vsub.f32 %v81, %v133
    %v135 = vand.u32 %v134, 4294901760
    %v136 = vsub.f32 %v134, %v135
    %v137 = vand.u32 %v136, 4294901760
    %138 = vmatpush.xpose.msra.mxu0 %v137
    %v139 = vand.u32 %v78, 4294901760
    %140 = vmatmul.f32.gmra.mxu0 %v139
    %v141 = vpop.f32.mrf.mxu0
    %v142 = vadd.f32 %v111, %v141
    %143 = vdwg.mxu0
    %144 = vmatpush.xpose.msra.mxu0 0.0
    %145 = vmatpush.xpose.msra.mxu0 0.0
    %146 = vmatpush.xpose.msra.mxu0 0.0
    %147 = vmatpush.xpose.msra.mxu0 0.0
    %148 = vmatpush.xpose.msra.mxu0 0.0
    %149 = vmatpush.xpose.msra.mxu0 0.0
    %150 = vmatpush.xpose.msra.mxu0 0.0
    %151 = vmatpush.xpose.msra.mxu0 0.0
    %152 = vmatpush.xpose.msra.mxu0 0.0
    %153 = vmatpush.xpose.msra.mxu0 0.0
    %154 = vmatpush.xpose.msra.mxu0 0.0
    %155 = vmatpush.xpose.msra.mxu0 0.0
    %156 = vmatpush.xpose.msra.mxu0 0.0
    %157 = vmatpush.xpose.msra.mxu0 0.0
    %v158 = vand.u32 %v84, 4294901760
    %v159 = vsub.f32 %v84, %v158
    %160 = vmatpush.xpose.msra.mxu0 %v159
    %v161 = vand.u32 %v81, 4294901760
    %v162 = vsub.f32 %v81, %v161
    %163 = vmatpush.xpose.msra.mxu0 %v162
    %v164 = vand.u32 %v78, 4294901760
    %v165 = vsub.f32 %v78, %v164
    %166 = vmatmul.f32.gmra.mxu0 %v165
    %v167 = vpop.f32.mrf.mxu0
    %v168 = vadd.f32 %v142, %v167
    %169 = vdwg.mxu0
    %170 = vmatpush.xpose.msra.mxu0 0.0
    %171 = vmatpush.xpose.msra.mxu0 0.0
    %172 = vmatpush.xpose.msra.mxu0 0.0
    %173 = vmatpush.xpose.msra.mxu0 0.0
    %174 = vmatpush.xpose.msra.mxu0 0.0
    %175 = vmatpush.xpose.msra.mxu0 0.0
    %176 = vmatpush.xpose.msra.mxu0 0.0
    %177 = vmatpush.xpose.msra.mxu0 0.0
    %178 = vmatpush.xpose.msra.mxu0 0.0
    %179 = vmatpush.xpose.msra.mxu0 0.0
    %180 = vmatpush.xpose.msra.mxu0 0.0
    %181 = vmatpush.xpose.msra.mxu0 0.0
    %182 = vmatpush.xpose.msra.mxu0 0.0
    %183 = vmatpush.xpose.msra.mxu0 0.0
    %v184 = vand.u32 %v84, 4294901760
    %185 = vmatpush.xpose.msra.mxu0 %v184
    %v186 = vand.u32 %v81, 4294901760
    %187 = vmatpush.xpose.msra.mxu0 %v186
    %v188 = vand.u32 %v78, 4294901760
    %v189 = vsub.f32 %v78, %v188
    %v190 = vand.u32 %v189, 4294901760
    %191 = vmatmul.f32.gmra.mxu0 %v190
    %v192 = vpop.f32.mrf.mxu0
    %v193 = vadd.f32 %v168, %v192
    %194 = vdwg.mxu0
    %195 = vmatpush.xpose.msra.mxu0 0.0
    %196 = vmatpush.xpose.msra.mxu0 0.0
    %197 = vmatpush.xpose.msra.mxu0 0.0
    %198 = vmatpush.xpose.msra.mxu0 0.0
    %199 = vmatpush.xpose.msra.mxu0 0.0
    %200 = vmatpush.xpose.msra.mxu0 0.0
    %201 = vmatpush.xpose.msra.mxu0 0.0
    %202 = vmatpush.xpose.msra.mxu0 0.0
    %203 = vmatpush.xpose.msra.mxu0 0.0
    %204 = vmatpush.xpose.msra.mxu0 0.0
    %205 = vmatpush.xpose.msra.mxu0 0.0
    %206 = vmatpush.xpose.msra.mxu0 0.0
    %207 = vmatpush.xpose.msra.mxu0 0.0
    %208 = vmatpush.xpose.msra.mxu0 0.0
    %v209 = vand.u32 %v84, 4294901760
    %v210 = vsub.f32 %v84, %v209
    %v211 = vand.u32 %v210, 4294901760
    %212 = vmatpush.xpose.msra.mxu0 %v211
    %v213 = vand.u32 %v81, 4294901760
    %v214 = vsub.f32 %v81, %v213
    %v215 = vand.u32 %v214, 4294901760
    %216 = vmatpush.xpose.msra.mxu0 %v215
    %v217 = vand.u32 %v78, 4294901760
    %218 = vmatmul.f32.gmra.mxu0 %v217
    %v219 = vpop.f32.mrf.mxu0
    %v220 = vadd.f32 %v193, %v219
    %221 = vdwg.mxu0
    %222 = vmatpush.xpose.msra.mxu0 0.0
    %223 = vmatpush.xpose.msra.mxu0 0.0
    %224 = vmatpush.xpose.msra.mxu0 0.0
    %225 = vmatpush.xpose.msra.mxu0 0.0
    %226 = vmatpush.xpose.msra.mxu0 0.0
    %227 = vmatpush.xpose.msra.mxu0 0.0
    %228 = vmatpush.xpose.msra.mxu0 0.0
    %229 = vmatpush.xpose.msra.mxu0 0.0
    %230 = vmatpush.xpose.msra.mxu0 0.0
    %231 = vmatpush.xpose.msra.mxu0 0.0
    %232 = vmatpush.xpose.msra.mxu0 0.0
    %233 = vmatpush.xpose.msra.mxu0 0.0
    %234 = vmatpush.xpose.msra.mxu0 0.0
    %235 = vmatpush.xpose.msra.mxu0 0.0
    %v236 = vand.u32 %v84, 4294901760
    %237 = vmatpush.xpose.msra.mxu0 %v236
    %v238 = vand.u32 %v81, 4294901760
    %239 = vmatpush.xpose.msra.mxu0 %v238
    %v240 = vand.u32 %v78, 4294901760
    %241 = vmatmul.f32.gmra.mxu0 %v240
    %v242 = vpop.f32.mrf.mxu0
    %v243 = vadd.f32 %v220, %v242
    %244 = vdwg.mxu0
    %v246 = vsel %vm76, %v74, 0
    %v249 = vsel %vm76, %v75, 0
    %251 = vmatpush.xpose.msra.mxu0 0.0
    %252 = vmatpush.xpose.msra.mxu0 0.0
    %253 = vmatpush.xpose.msra.mxu0 0.0
    %254 = vmatpush.xpose.msra.mxu0 0.0
    %255 = vmatpush.xpose.msra.mxu0 0.0
    %256 = vmatpush.xpose.msra.mxu0 0.0
    %257 = vmatpush.xpose.msra.mxu0 0.0
    %258 = vmatpush.xpose.msra.mxu0 0.0
    %259 = vmatpush.xpose.msra.mxu0 0.0
    %260 = vmatpush.xpose.msra.mxu0 0.0
    %261 = vmatpush.xpose.msra.mxu0 0.0
    %262 = vmatpush.xpose.msra.mxu0 0.0
    %263 = vmatpush.xpose.msra.mxu0 0.0
    %264 = vmatpush.xpose.msra.mxu0 0.0
    %v265 = vand.u32 %v249, 4294901760
    %266 = vmatpush.xpose.msra.mxu0 %v265
    %v267 = vand.u32 %v246, 4294901760
    %268 = vmatpush.xpose.msra.mxu0 %v267
    %v269 = vand.u32 %v78, 4294901760
    %v270 = vsub.f32 %v78, %v269
    %v271 = vand.u32 %v270, 4294901760
    %v272 = vsub.f32 %v270, %v271
    %v273 = vand.u32 %v272, 4294901760
    %274 = vmatmul.f32.gmra.mxu0 %v273
    %v275 = vpop.f32.mrf.mxu0
    %v276 = vadd.f32 0.0, %v275
    %277 = vdwg.mxu0
    %278 = vmatpush.xpose.msra.mxu0 0.0
    %279 = vmatpush.xpose.msra.mxu0 0.0
    %280 = vmatpush.xpose.msra.mxu0 0.0
    %281 = vmatpush.xpose.msra.mxu0 0.0
    %282 = vmatpush.xpose.msra.mxu0 0.0
    %283 = vmatpush.xpose.msra.mxu0 0.0
    %284 = vmatpush.xpose.msra.mxu0 0.0
    %285 = vmatpush.xpose.msra.mxu0 0.0
    %286 = vmatpush.xpose.msra.mxu0 0.0
    %287 = vmatpush.xpose.msra.mxu0 0.0
    %288 = vmatpush.xpose.msra.mxu0 0.0
    %289 = vmatpush.xpose.msra.mxu0 0.0
    %290 = vmatpush.xpose.msra.mxu0 0.0
    %291 = vmatpush.xpose.msra.mxu0 0.0
    %v292 = vand.u32 %v249, 4294901760
    %v293 = vsub.f32 %v249, %v292
    %v294 = vand.u32 %v293, 4294901760
    %v295 = vsub.f32 %v293, %v294
    %v296 = vand.u32 %v295, 4294901760
    %297 = vmatpush.xpose.msra.mxu0 %v296
    %v298 = vand.u32 %v246, 4294901760
    %v299 = vsub.f32 %v246, %v298
    %v300 = vand.u32 %v299, 4294901760
    %v301 = vsub.f32 %v299, %v300
    %v302 = vand.u32 %v301, 4294901760
    %303 = vmatpush.xpose.msra.mxu0 %v302
    %v304 = vand.u32 %v78, 4294901760
    %305 = vmatmul.f32.gmra.mxu0 %v304
    %v306 = vpop.f32.mrf.mxu0
    %v307 = vadd.f32 %v276, %v306
    %308 = vdwg.mxu0
    %309 = vmatpush.xpose.msra.mxu0 0.0
    %310 = vmatpush.xpose.msra.mxu0 0.0
    %311 = vmatpush.xpose.msra.mxu0 0.0
    %312 = vmatpush.xpose.msra.mxu0 0.0
    %313 = vmatpush.xpose.msra.mxu0 0.0
    %314 = vmatpush.xpose.msra.mxu0 0.0
    %315 = vmatpush.xpose.msra.mxu0 0.0
    %316 = vmatpush.xpose.msra.mxu0 0.0
    %317 = vmatpush.xpose.msra.mxu0 0.0
    %318 = vmatpush.xpose.msra.mxu0 0.0
    %319 = vmatpush.xpose.msra.mxu0 0.0
    %320 = vmatpush.xpose.msra.mxu0 0.0
    %321 = vmatpush.xpose.msra.mxu0 0.0
    %322 = vmatpush.xpose.msra.mxu0 0.0
    %v323 = vand.u32 %v249, 4294901760
    %v324 = vsub.f32 %v249, %v323
    %325 = vmatpush.xpose.msra.mxu0 %v324
    %v326 = vand.u32 %v246, 4294901760
    %v327 = vsub.f32 %v246, %v326
    %328 = vmatpush.xpose.msra.mxu0 %v327
    %v329 = vand.u32 %v78, 4294901760
    %v330 = vsub.f32 %v78, %v329
    %331 = vmatmul.f32.gmra.mxu0 %v330
    %v332 = vpop.f32.mrf.mxu0
    %v333 = vadd.f32 %v307, %v332
    %334 = vdwg.mxu0
    %335 = vmatpush.xpose.msra.mxu0 0.0
    %336 = vmatpush.xpose.msra.mxu0 0.0
    %337 = vmatpush.xpose.msra.mxu0 0.0
    %338 = vmatpush.xpose.msra.mxu0 0.0
    %339 = vmatpush.xpose.msra.mxu0 0.0
    %340 = vmatpush.xpose.msra.mxu0 0.0
    %341 = vmatpush.xpose.msra.mxu0 0.0
    %342 = vmatpush.xpose.msra.mxu0 0.0
    %343 = vmatpush.xpose.msra.mxu0 0.0
    %344 = vmatpush.xpose.msra.mxu0 0.0
    %345 = vmatpush.xpose.msra.mxu0 0.0
    %346 = vmatpush.xpose.msra.mxu0 0.0
    %347 = vmatpush.xpose.msra.mxu0 0.0
    %348 = vmatpush.xpose.msra.mxu0 0.0
    %v349 = vand.u32 %v249, 4294901760
    %350 = vmatpush.xpose.msra.mxu0 %v349
    %v351 = vand.u32 %v246, 4294901760
    %352 = vmatpush.xpose.msra.mxu0 %v351
    %v353 = vand.u32 %v78, 4294901760
    %v354 = vsub.f32 %v78, %v353
    %v355 = vand.u32 %v354, 4294901760
    %356 = vmatmul.f32.gmra.mxu0 %v355
    %v357 = vpop.f32.mrf.mxu0
    %v358 = vadd.f32 %v333, %v357
    %359 = vdwg.mxu0
    %360 = vmatpush.xpose.msra.mxu0 0.0
    %361 = vmatpush.xpose.msra.mxu0 0.0
    %362 = vmatpush.xpose.msra.mxu0 0.0
    %363 = vmatpush.xpose.msra.mxu0 0.0
    %364 = vmatpush.xpose.msra.mxu0 0.0
    %365 = vmatpush.xpose.msra.mxu0 0.0
    %366 = vmatpush.xpose.msra.mxu0 0.0
    %367 = vmatpush.xpose.msra.mxu0 0.0
    %368 = vmatpush.xpose.msra.mxu0 0.0
    %369 = vmatpush.xpose.msra.mxu0 0.0
    %370 = vmatpush.xpose.msra.mxu0 0.0
    %371 = vmatpush.xpose.msra.mxu0 0.0
    %372 = vmatpush.xpose.msra.mxu0 0.0
    %373 = vmatpush.xpose.msra.mxu0 0.0
    %v374 = vand.u32 %v249, 4294901760
    %v375 = vsub.f32 %v249, %v374
    %v376 = vand.u32 %v375, 4294901760
    %377 = vmatpush.xpose.msra.mxu0 %v376
    %v378 = vand.u32 %v246, 4294901760
    %v379 = vsub.f32 %v246, %v378
    %v380 = vand.u32 %v379, 4294901760
    %381 = vmatpush.xpose.msra.mxu0 %v380
    %v382 = vand.u32 %v78, 4294901760
    %383 = vmatmul.f32.gmra.mxu0 %v382
    %v384 = vpop.f32.mrf.mxu0
    %v385 = vadd.f32 %v358, %v384
    %386 = vdwg.mxu0
    %387 = vmatpush.xpose.msra.mxu0 0.0
    %388 = vmatpush.xpose.msra.mxu0 0.0
    %389 = vmatpush.xpose.msra.mxu0 0.0
    %390 = vmatpush.xpose.msra.mxu0 0.0
    %391 = vmatpush.xpose.msra.mxu0 0.0
    %392 = vmatpush.xpose.msra.mxu0 0.0
    %393 = vmatpush.xpose.msra.mxu0 0.0
    %394 = vmatpush.xpose.msra.mxu0 0.0
    %395 = vmatpush.xpose.msra.mxu0 0.0
    %396 = vmatpush.xpose.msra.mxu0 0.0
    %397 = vmatpush.xpose.msra.mxu0 0.0
    %398 = vmatpush.xpose.msra.mxu0 0.0
    %399 = vmatpush.xpose.msra.mxu0 0.0
    %400 = vmatpush.xpose.msra.mxu0 0.0
    %v401 = vand.u32 %v249, 4294901760
    %402 = vmatpush.xpose.msra.mxu0 %v401
    %v403 = vand.u32 %v246, 4294901760
    %404 = vmatpush.xpose.msra.mxu0 %v403
    %v405 = vand.u32 %v78, 4294901760
    %406 = vmatmul.f32.gmra.mxu0 %v405
    %v407 = vpop.f32.mrf.mxu0
    %v408 = vadd.f32 %v385, %v407
    %409 = vdwg.mxu0
    %v410 = vmul.f32 %v243, 0.03125
    %v411 = vsub.f32 1.0, %v410
    %v412 = vlog2.pop %v411
    %v413 = vmul.f32 %v412, 0.6931472
    %v414 = vsub.f32 0.0, %v413
    %v415 = vsub.f32 32.0, %v408
    %v416 = vmul.f32 %v415, 0.03125
    %v417 = vsub.f32 1.0, %v416
    %v418 = vlog2.pop %v417
    %v419 = vmul.f32 %v418, 0.6931472
    %v420 = vsub.f32 0.0, %v419
    %v421 = vadd.f32 %v414, %v420
    %vm422 = vcmask 122880
    %423 = vst.msk [vmem:[#allocation8] sm:$0x1] %vm422, %v421
    // Predicated region
    $region26: #{tpu_custom_call.1} parent=1 // pred_check
      _
    $region27: #{tpu_custom_call.1} parent=1 // pred_check_branch
      %425 = sbr.rel (0) target = $region29
    $region28: #{tpu_custom_call.1} parent=1 // pred_region
      %427 = vsyncadd [#allocation4], 0
      %s429 = sshll.u32 [#allocation8], 4
      %s430 = int_to_ptr.vmem [resolvable:$true] %s429
      %s431 = sshll.u32 %s3, 4
      %s432 = int_to_ptr.hbm [resolvable:$true] %s431
      %434 = dma.vmem_to_hbm [thread:$0]  %s430, 16, %s432, [#allocation4]
    $region29: #{tpu_custom_call.1} parent=1 // pred_fallthru
      _
    // Predicated region
    $region30: #{tpu_custom_call.1} parent=1 // pred_check
      _
    $region31: #{tpu_custom_call.1} parent=1 // pred_check_branch
      %436 = sbr.rel (0) target = $region33
    $region32: #{tpu_custom_call.1} parent=1 // pred_region
      %438 = dma.done [#allocation4], 16
    $region33: #{tpu_custom_call.1} parent=1 // pred_fallthru
      _
    %439 = vsyncpa [#allocation3], 1
    %440 = vsyncpa [#allocation6], 1
    %441 = vsyncpa [#allocation4], 1

</llo_original>
